<compile_context>
chip_gen: v7x
topology: tpu7x:2x2x1
jax: 0.10.0
libtpu: 0.0.40
codegen_flags: <defaults>
</compile_context>

<pallas_src>
import jax
import jax.numpy as jnp
from jax.experimental import pallas as pl
from jax.experimental.pallas import tpu as pltpu

# ---------------- synthetic model dimensions ----------------
N = 8            # batch size
A = 4            # alphabet size (e.g. DNA one-hot)
L = 16           # sequence length
K = 5            # conv kernel width
LOUT = L - K + 1 # 12
C = 32           # conv channels / hidden size
M = 3            # ensemble size

MC = M * C       # 96  (all ensemble members stacked on rows)
NL = N * LOUT    # 96  (all output positions stacked on lanes)
AK = A * K       # 20  (contraction dim)
AKP = 32         # contraction dim zero-padded (one pad slot reused for bias)


# ---------------- Pallas kernel (single invocation, whole ensemble) ----------
def ensemble_kernel(wt_ref, pat_ref, hwt_ref, hb_ref, out_ref):
    # conv1d + bias for ALL M members at once (bias folded into the MXU
    # contraction via the all-ones patch row):
    #   (M*C, AKP) @ (AKP, N*Lout) -> (M*C, N*Lout)
    h = jnp.dot(wt_ref[...], pat_ref[...], preferred_element_type=jnp.float32)
    h = jnp.maximum(h, 0.0)                                   # ReLU (f32)

    # linear head for all members; ensemble mean AND pool scale pre-folded:
    #   (1, M*C) @ (M*C, N*Lout) -> (1, N*Lout)
    z = jnp.dot(hwt_ref[...], h, preferred_element_type=jnp.float32)

    # sum-pool over Lout as a matmul against an in-kernel binary pool matrix
    # (no HBM operand needed); output is lane-dense (1, N).
    r = jax.lax.broadcasted_iota(jnp.int32, (NL, N), 0)       # position index
    c = jax.lax.broadcasted_iota(jnp.int32, (NL, N), 1)       # batch index
    pool = jnp.where((r >= c * LOUT) & (r < (c + 1) * LOUT),
                     jnp.float32(1.0), jnp.float32(0.0))      # (NL, N)
    out_ref[...] = (jnp.dot(z, pool, preferred_element_type=jnp.float32)
                    + hb_ref[0, 0])


def _pallas_predict(wt, patT, hwt, hb):
    bytes_accessed = 4 * (wt.size + patT.size + hwt.size + hb.size + N)
    return pl.pallas_call(
        ensemble_kernel,
        out_shape=jax.ShapeDtypeStruct((1, N), jnp.float32),
        in_specs=[
            pl.BlockSpec(memory_space=pltpu.MemorySpace.VMEM),   # wt   (MC, AKP)
            pl.BlockSpec(memory_space=pltpu.MemorySpace.VMEM),   # patT (AKP, NL)
            pl.BlockSpec(memory_space=pltpu.MemorySpace.VMEM),   # hwt  (1, MC)
            pl.BlockSpec(memory_space=pltpu.MemorySpace.SMEM),   # hb   (1, 1)
        ],
        out_specs=pl.BlockSpec(memory_space=pltpu.MemorySpace.VMEM),
        cost_estimate=pl.CostEstimate(
            flops=2 * (MC * AKP * NL + MC * NL + NL * N),
            transcendentals=0,
            bytes_accessed=bytes_accessed,
        ),
    )(wt, patT, hwt, hb)


# ---------------- parameter packing (hoisted out of the per-call path) -------
def prepare_params(conv_w, conv_b, head_w, head_b):
    """One-time packing of the M-member ensemble into row-stacked matrices."""
    # conv weights: (M, A*K, C) -> (M*C, A*K), rows ordered (m, c).
    wt = jnp.transpose(conv_w, (0, 2, 1)).reshape(MC, AK)
    # conv biases folded as one extra contraction column; rest of pad is zero.
    bcol = conv_b.reshape(MC, 1)
    wt = jnp.concatenate(
        [wt, bcol, jnp.zeros((MC, AKP - AK - 1), jnp.float32)], axis=1)  # (MC, AKP)
    # head weights: (M, C, 1) -> (1, M*C), pre-scaled by 1/(M*Lout)
    # (ensemble mean + global-average-pool scale folded in).
    hwt = head_w.reshape(1, MC) / (M * LOUT)
    # head biases: ensemble-mean scalar, lives in SMEM.
    hb = jnp.mean(head_b).reshape(1, 1)
    return wt, hwt, hb


# ---------------- forward (== ModelWrapper.forward) --------------------------
@jax.jit
def model_wrapper_predict(x, wt, hwt, hb):
    """x: (N, A, L) float32. Returns ensemble-mean predictions of shape (N,)."""
    n, a, l = x.shape
    lout = l - K + 1
    # im2col, transposed: (N, A, L) -> (A*K, N*Lout); feature order (a, k),
    # column order (n, l).  Row AK is all-ones (bias row); remaining rows up to
    # AKP are zero.  Fused by XLA under the same jit as the pallas_call.
    idx = jnp.arange(lout)[:, None] + jnp.arange(K)[None, :]      # (Lout, K)
    pat = x[:, :, idx]                                            # (N, A, Lout, K)
    patT = pat.transpose(1, 3, 0, 2).reshape(a * K, n * lout)     # (AK, NL)
    ones_row = jnp.ones((1, n * lout), patT.dtype)                # bias row
    zero_rows = jnp.zeros((AKP - a * K - 1, n * lout), patT.dtype)
    patT = jnp.concatenate([patT, ones_row, zero_rows], axis=0)   # (AKP, NL)

    out = _pallas_predict(wt, patT, hwt, hb)                      # (1, N)
    return out[0]                                                 # (N,)
    # TODO(synk): for a v7x-scale batch, add a leading grid axis tiled over N
    # marked "parallel" so both TensorCores do work.


# ---------------- pure-JAX reference (unfolded math) -------------------------
def _reference_predict(x, conv_w, conv_b, head_w, head_b):
    n, a, l = x.shape
    lout = l - K + 1
    idx = jnp.arange(lout)[:, None] + jnp.arange(K)[None, :]
    patches = x[:, :, idx].transpose(0, 2, 1, 3).reshape(n, lout, a * K)
    preds = []
    for m in range(M):
        h = jnp.maximum(patches @ conv_w[m] + conv_b[m, 0], 0.0)  # (N,Lout,C)
        pooled = h.mean(axis=1)                                   # (N, C)
        preds.append((pooled @ head_w[m])[:, 0] + head_b[m, 0, 0])
    return jnp.stack(preds).mean(axis=0)


if __name__ == "__main__":
    key = jax.random.PRNGKey(0)
    kx, kw, kb, khw, khb = jax.random.split(key, 5)

    # deterministic synthetic parameters (one set per ensemble member)
    conv_w = 0.1 * jax.random.normal(kw,  (M, A * K, C), dtype=jnp.float32)
    conv_b = 0.1 * jax.random.normal(kb,  (M, 1, C),     dtype=jnp.float32)
    head_w = 0.1 * jax.random.normal(khw, (M, C, 1),     dtype=jnp.float32)
    head_b = 0.1 * jax.random.normal(khb, (M, 1, 1),     dtype=jnp.float32)

    # deterministic example input: (N, A, L) one-hot sequences
    logits = jax.random.normal(kx, (N, A, L), dtype=jnp.float32)
    x = jax.nn.one_hot(jnp.argmax(logits, axis=1), A, axis=1,
                       dtype=jnp.float32)                         # (N, A, L)

    params = prepare_params(conv_w, conv_b, head_w, head_b)       # once
    pred = model_wrapper_predict(x, *params)
    pred = jax.block_until_ready(pred)

    ref = _reference_predict(x, conv_w, conv_b, head_w, head_b)
    assert pred.shape == (N,)
    assert jnp.allclose(pred, ref, atol=1e-5, rtol=1e-5), (pred, ref)

    print("KERNEL_OK")
</pallas_src>

<mosaic_0001>
module attributes {stable_mosaic.version = 11 : i64} {
  func.func @ensemble_kernel(%arg0: memref<96x32xf32, #tpu.memory_space<vmem>>, %arg1: memref<32x96xf32, #tpu.memory_space<vmem>>, %arg2: memref<1x96xf32, #tpu.memory_space<vmem>>, %arg3: memref<1x1xf32, #tpu.memory_space<smem>>, %arg4: memref<1x8xf32, #tpu.memory_space<vmem>>) attributes {dimension_semantics = [], scalar_prefetch = 0 : i64, scratch_operands = 0 : i64, tpu.core_type = #tpu.core_type<tc>} {
    %c0 = arith.constant 0 : index
    %c0_0 = arith.constant 0 : index
    %0 = vector.load %arg0[%c0, %c0_0] : memref<96x32xf32, #tpu.memory_space<vmem>>, vector<96x32xf32>
    %c0_1 = arith.constant 0 : index
    %c0_2 = arith.constant 0 : index
    %1 = vector.load %arg1[%c0_1, %c0_2] : memref<32x96xf32, #tpu.memory_space<vmem>>, vector<32x96xf32>
    %cst = arith.constant dense<0.000000e+00> : vector<96x96xf32>
    %2 = tpu.matmul %0, %1, %cst {dimension_numbers = #tpu.dot_dimension_numbers<[1], [0], [0], [1], [0, 0, 1, 1], [], []>} : vector<96x32xf32>, vector<32x96xf32>, vector<96x96xf32> -> vector<96x96xf32>
    %cst_3 = arith.constant 0.000000e+00 : f32
    %3 = vector.broadcast %cst_3 : f32 to vector<96x96xf32>
    %4 = arith.maximumf %2, %3 : vector<96x96xf32>
    %c0_4 = arith.constant 0 : index
    %c0_5 = arith.constant 0 : index
    %5 = vector.load %arg2[%c0_4, %c0_5] : memref<1x96xf32, #tpu.memory_space<vmem>>, vector<1x96xf32>
    %cst_6 = arith.constant dense<0.000000e+00> : vector<1x96xf32>
    %6 = tpu.matmul %5, %4, %cst_6 {dimension_numbers = #tpu.dot_dimension_numbers<[1], [0], [0], [1], [0, 0, 1, 1], [], []>} : vector<1x96xf32>, vector<96x96xf32>, vector<1x96xf32> -> vector<1x96xf32>
    %7 = tpu.iota {dimensions = array<i32: 0>} : vector<96x8xi32>
    %8 = tpu.iota {dimensions = array<i32: 1>} : vector<96x8xi32>
    %c12_i32 = arith.constant 12 : i32
    %9 = vector.broadcast %c12_i32 : i32 to vector<96x8xi32>
    %10 = arith.muli %8, %9 : vector<96x8xi32>
    %11 = arith.cmpi sge, %7, %10 : vector<96x8xi32>
    %c1_i32 = arith.constant 1 : i32
    %12 = vector.broadcast %c1_i32 : i32 to vector<96x8xi32>
    %13 = arith.addi %8, %12 : vector<96x8xi32>
    %c12_i32_7 = arith.constant 12 : i32
    %14 = vector.broadcast %c12_i32_7 : i32 to vector<96x8xi32>
    %15 = arith.muli %13, %14 : vector<96x8xi32>
    %16 = arith.cmpi slt, %7, %15 : vector<96x8xi32>
    %17 = arith.andi %11, %16 : vector<96x8xi1>
    %cst_8 = arith.constant 1.000000e+00 : f32
    %cst_9 = arith.constant 0.000000e+00 : f32
    %18 = vector.broadcast %cst_8 : f32 to vector<96x8xf32>
    %19 = vector.broadcast %cst_9 : f32 to vector<96x8xf32>
    %20 = arith.select %17, %18, %19 : vector<96x8xi1>, vector<96x8xf32>
    %cst_10 = arith.constant dense<0.000000e+00> : vector<1x8xf32>
    %21 = tpu.matmul %6, %20, %cst_10 {dimension_numbers = #tpu.dot_dimension_numbers<[1], [0], [0], [1], [0, 0, 1, 1], [], []>} : vector<1x96xf32>, vector<96x8xf32>, vector<1x8xf32> -> vector<1x8xf32>
    %c0_11 = arith.constant 0 : index
    %c0_12 = arith.constant 0 : index
    %22 = memref.load %arg3[%c0_11, %c0_12] : memref<1x1xf32, #tpu.memory_space<smem>>
    %23 = vector.broadcast %22 : f32 to vector<1x8xf32>
    %24 = arith.addf %21, %23 : vector<1x8xf32>
    %c0_13 = arith.constant 0 : index
    %c0_14 = arith.constant 0 : index
    %25 = vector.load %arg4[%c0_13, %c0_14] : memref<1x8xf32, #tpu.memory_space<vmem>>, vector<1x8xf32>
    tpu.vector_store %arg4[%c0_13, %c0_14], %24 {strides = array<i32>} : memref<1x8xf32, #tpu.memory_space<vmem>>, vector<1x8xf32>,
    return
  }
}

</mosaic_0001>

<llo_original>
// kernel: model_wrapper_predict.1
$region0: #{model_wrapper_predict.1}
  #allocation0 [shape = 'u32[]', space=smem, size = 0x4, offset = 0x4, fixed_abs, tag = 'smem constant byte address 0x4 - core index']
  #allocation1 [shape = 'u32[144,128]{1,0:T(1,128)}', space=vmem, size = 0x12000, scoped, tag = 'internal scratch']
  #allocation2 [shape = 'f32[1,1]{1,0:T(1,128)S(6)}', space=smem, size = 0x200, scoped, tag = 'scoped memory for model_wrapper_predict.1']
  %s0 = inlined_call_operand.vmem [shape: f32[96,32], index: 0, kind: input, shape index: {}]
  %s1 = inlined_call_operand.vmem [shape: f32[32,96], index: 1, kind: input, shape index: {}]
  %s2 = inlined_call_operand.vmem [shape: f32[1,96], index: 2, kind: input, shape index: {}]
  %s3 = inlined_call_operand.<no memory space> [shape: f32[1,1], index: 3, kind: input, shape index: {}]
  %s4 = inlined_call_operand.hbm [shape: f32[1,8], index: 4, kind: output, shape index: {}]
  %s5 = sld [smem:[#allocation0]]
  $region26: #{model_wrapper_predict.1} parent=0
    _
  %s7 = ssub.s32 1, %s5
  %s8 = scalar_select 0, %s7, %s5
  %9 = sst [smem:[#allocation2]] %s3
  $region1: #{model_wrapper_predict.1} parent=0
    #allocation3 [shape = 'u8[512]{0}', space=vmem, size = 0x400, scoped, tag = 'output window, operand 0, single buffered']
    #allocation4 [shape = 's32[1]{0}', space=sflag, size = 0x4, scoped, tag = 'scoped memory for model_wrapper_predict.1']
    %10 = vsyncpa [#allocation4], 0
    // Predicated region
    $region2: #{model_wrapper_predict.1} parent=1 // pred_check
      _
    $region3: #{model_wrapper_predict.1} parent=1 // pred_check_branch
      %12 = sbr.rel (0) target = $region5
    $region4: #{model_wrapper_predict.1} parent=1 // pred_region
      _
    $region5: #{model_wrapper_predict.1} parent=1 // pred_fallthru
      _
    // Predicated region
    $region6: #{model_wrapper_predict.1} parent=1 // pred_check
      _
    $region7: #{model_wrapper_predict.1} parent=1 // pred_check_branch
      %14 = sbr.rel (0) target = $region9
    $region8: #{model_wrapper_predict.1} parent=1 // pred_region
      _
    $region9: #{model_wrapper_predict.1} parent=1 // pred_fallthru
      _
    // Predicated region
    $region10: #{model_wrapper_predict.1} parent=1 // pred_check
      _
    $region11: #{model_wrapper_predict.1} parent=1 // pred_check_branch
      %16 = sbr.rel (0) target = $region13
    $region12: #{model_wrapper_predict.1} parent=1 // pred_region
      _
    $region13: #{model_wrapper_predict.1} parent=1 // pred_fallthru
      _
    // Predicated region
    $region14: #{model_wrapper_predict.1} parent=1 // pred_check
      _
    $region15: #{model_wrapper_predict.1} parent=1 // pred_check_branch
      %18 = sbr.rel (0) target = $region17
    $region16: #{model_wrapper_predict.1} parent=1 // pred_region
      _
    $region17: #{model_wrapper_predict.1} parent=1 // pred_fallthru
      _
    %v19 = vld [vmem:[%s0] sm:$0xff]
    %v20 = vld [vmem:[%s0 + $0x8] sm:$0xff]
    %v21 = vld [vmem:[%s0 + $0x10] sm:$0xff]
    %v22 = vld [vmem:[%s0 + $0x18] sm:$0xff]
    %v23 = vld [vmem:[%s0 + $0x20] sm:$0xff]
    %v24 = vld [vmem:[%s0 + $0x28] sm:$0xff]
    %v25 = vld [vmem:[%s0 + $0x30] sm:$0xff]
    %v26 = vld [vmem:[%s0 + $0x38] sm:$0xff]
    %v27 = vld [vmem:[%s0 + $0x40] sm:$0xff]
    %v28 = vld [vmem:[%s0 + $0x48] sm:$0xff]
    %v29 = vld [vmem:[%s0 + $0x50] sm:$0xff]
    %v30 = vld [vmem:[%s0 + $0x58] sm:$0xff]
    %v31 = vld [vmem:[%s1] sm:$0xff]
    %v32 = vld [vmem:[%s1 + $0x8] sm:$0xff]
    %v33 = vld [vmem:[%s1 + $0x10] sm:$0xff]
    %v34 = vld [vmem:[%s1 + $0x18] sm:$0xff]
    %vm35 = vcmask 261120
    %v37 = vsel %vm35, %v19, 0
    %v40 = vsel %vm35, %v20, 0
    %v43 = vsel %vm35, %v21, 0
    %v46 = vsel %vm35, %v22, 0
    %v49 = vsel %vm35, %v23, 0
    %v52 = vsel %vm35, %v24, 0
    %v55 = vsel %vm35, %v25, 0
    %v58 = vsel %vm35, %v26, 0
    %v61 = vsel %vm35, %v27, 0
    %v64 = vsel %vm35, %v28, 0
    %v67 = vsel %vm35, %v29, 0
    %v70 = vsel %vm35, %v30, 0
    %72 = vmatprep.subr.mxu0 0.0
    %73 = vmatpush1.msra.mxu0 %v31
    %74 = vmatprep.subr.mxu0 0.0
    %75 = vmatpush1.msra.mxu0 %v32
    %76 = vmatprep.subr.mxu0 0.0
    %77 = vmatpush1.msra.mxu0 %v33
    %78 = vmatprep.subr.mxu0 0.0
    %79 = vmatpush1.msra.mxu0 %v34
    %80 = vmatprep.subr.mxu0 0.0
    %81 = vmatpush1.msra.mxu0 0.0
    %82 = vmatprep.subr.mxu0 0.0
    %83 = vmatpush1.msra.mxu0 0.0
    %84 = vmatprep.subr.mxu0 0.0
    %85 = vmatpush1.msra.mxu0 0.0
    %86 = vmatprep.subr.mxu0 0.0
    %87 = vmatpush1.msra.mxu0 0.0
    %88 = vmatprep.subr.mxu0 0.0
    %89 = vmatpush1.msra.mxu0 0.0
    %90 = vmatprep.subr.mxu0 0.0
    %91 = vmatpush1.msra.mxu0 0.0
    %92 = vmatprep.subr.mxu0 0.0
    %93 = vmatpush1.msra.mxu0 0.0
    %94 = vmatprep.subr.mxu0 0.0
    %95 = vmatpush1.msra.mxu0 0.0
    %96 = vmatprep.subr.mxu0 0.0
    %97 = vmatpush1.msra.mxu0 0.0
    %98 = vmatprep.subr.mxu0 0.0
    %99 = vmatpush1.msra.mxu0 0.0
    %100 = vmatprep.subr.mxu0 0.0
    %101 = vmatpush1.msra.mxu0 0.0
    %102 = vmatprep.subr.mxu0 0.0
    %103 = vmatpush1.msra.mxu0 0.0
    %104 = vmatprep.subr.mxu0 0.0
    %105 = vmatpush1.msra.mxu0 0.0
    %106 = vmatprep.subr.mxu0 0.0
    %107 = vmatpush1.msra.mxu0 0.0
    %108 = vmatprep.subr.mxu0 0.0
    %109 = vmatpush1.msra.mxu0 0.0
    %110 = vmatprep.subr.mxu0 0.0
    %111 = vmatpush1.msra.mxu0 0.0
    %112 = vmatprep.subr.mxu0 0.0
    %113 = vmatpush1.msra.mxu0 0.0
    %114 = vmatprep.subr.mxu0 0.0
    %115 = vmatpush1.msra.mxu0 0.0
    %116 = vmatprep.subr.mxu0 0.0
    %117 = vmatpush1.msra.mxu0 0.0
    %118 = vmatprep.subr.mxu0 0.0
    %119 = vmatpush1.msra.mxu0 0.0
    %120 = vmatprep.subr.mxu0 0.0
    %121 = vmatpush1.msra.mxu0 0.0
    %122 = vmatprep.subr.mxu0 0.0
    %123 = vmatpush1.msra.mxu0 0.0
    %124 = vmatprep.subr.mxu0 0.0
    %125 = vmatpush1.msra.mxu0 0.0
    %126 = vmatprep.subr.mxu0 0.0
    %127 = vmatpush1.msra.mxu0 0.0
    %128 = vmatprep.subr.mxu0 0.0
    %129 = vmatpush1.msra.mxu0 0.0
    %130 = vmatprep.subr.mxu0 0.0
    %131 = vmatpush1.msra.mxu0 0.0
    %132 = vmatprep.subr.mxu0 0.0
    %133 = vmatpush1.msra.mxu0 0.0
    %134 = vmatprep.subr.mxu0 0.0
    %135 = vmatpush1.msra.mxu0 0.0
    %136 = vmatprep.mubr.f32.mxu0 0.0
    %137 = vmatmul.mubr.f32.gmra.mrb[0].mxu0 %v37
    %v138 = vpop.f32.mrb[0].mxu0
    %v139 = vadd.f32 0.0, %v138
    %v140 = vpop.f32.mrb[0].mxu0
    %141 = vmatprep.mubr.f32.mxu0 0.0
    %142 = vmatmul.mubr.f32.gmra.mrb[0].mxu0 %v40
    %v143 = vpop.f32.mrb[0].mxu0
    %v144 = vadd.f32 0.0, %v143
    %v145 = vpop.f32.mrb[0].mxu0
    %146 = vmatprep.mubr.f32.mxu0 0.0
    %147 = vmatmul.mubr.f32.gmra.mrb[0].mxu0 %v43
    %v148 = vpop.f32.mrb[0].mxu0
    %v149 = vadd.f32 0.0, %v148
    %v150 = vpop.f32.mrb[0].mxu0
    %151 = vmatprep.mubr.f32.mxu0 0.0
    %152 = vmatmul.mubr.f32.gmra.mrb[0].mxu0 %v46
    %v153 = vpop.f32.mrb[0].mxu0
    %v154 = vadd.f32 0.0, %v153
    %v155 = vpop.f32.mrb[0].mxu0
    %156 = vmatprep.mubr.f32.mxu0 0.0
    %157 = vmatmul.mubr.f32.gmra.mrb[0].mxu0 %v49
    %v158 = vpop.f32.mrb[0].mxu0
    %v159 = vadd.f32 0.0, %v158
    %v160 = vpop.f32.mrb[0].mxu0
    %161 = vmatprep.mubr.f32.mxu0 0.0
    %162 = vmatmul.mubr.f32.gmra.mrb[0].mxu0 %v52
    %v163 = vpop.f32.mrb[0].mxu0
    %v164 = vadd.f32 0.0, %v163
    %v165 = vpop.f32.mrb[0].mxu0
    %166 = vmatprep.mubr.f32.mxu0 0.0
    %167 = vmatmul.mubr.f32.gmra.mrb[0].mxu0 %v55
    %v168 = vpop.f32.mrb[0].mxu0
    %v169 = vadd.f32 0.0, %v168
    %v170 = vpop.f32.mrb[0].mxu0
    %171 = vmatprep.mubr.f32.mxu0 0.0
    %172 = vmatmul.mubr.f32.gmra.mrb[0].mxu0 %v58
    %v173 = vpop.f32.mrb[0].mxu0
    %v174 = vadd.f32 0.0, %v173
    %v175 = vpop.f32.mrb[0].mxu0
    %176 = vmatprep.mubr.f32.mxu0 0.0
    %177 = vmatmul.mubr.f32.gmra.mrb[0].mxu0 %v61
    %v178 = vpop.f32.mrb[0].mxu0
    %v179 = vadd.f32 0.0, %v178
    %v180 = vpop.f32.mrb[0].mxu0
    %181 = vmatprep.mubr.f32.mxu0 0.0
    %182 = vmatmul.mubr.f32.gmra.mrb[0].mxu0 %v64
    %v183 = vpop.f32.mrb[0].mxu0
    %v184 = vadd.f32 0.0, %v183
    %v185 = vpop.f32.mrb[0].mxu0
    %186 = vmatprep.mubr.f32.mxu0 0.0
    %187 = vmatmul.mubr.f32.gmra.mrb[0].mxu0 %v67
    %v188 = vpop.f32.mrb[0].mxu0
    %v189 = vadd.f32 0.0, %v188
    %v190 = vpop.f32.mrb[0].mxu0
    %191 = vmatprep.mubr.f32.mxu0 0.0
    %192 = vmatmul.mubr.f32.gmra.mrb[0].mxu0 %v70
    %v193 = vpop.f32.mrb[0].mxu0
    %v194 = vadd.f32 0.0, %v193
    %v195 = vpop.f32.mrb[0].mxu0
    %196 = vdwg.mxu0
    %v197 = vmax.f32 %v139, 0.0
    %v198 = vmax.f32 %v144, 0.0
    %v199 = vmax.f32 %v149, 0.0
    %v200 = vmax.f32 %v154, 0.0
    %v201 = vmax.f32 %v159, 0.0
    %v202 = vmax.f32 %v164, 0.0
    %v203 = vmax.f32 %v169, 0.0
    %v204 = vmax.f32 %v174, 0.0
    %v205 = vmax.f32 %v179, 0.0
    %v206 = vmax.f32 %v184, 0.0
    %v207 = vmax.f32 %v189, 0.0
    %v208 = vmax.f32 %v194, 0.0
    %v209 = vld [vmem:[%s2] sm:$0x1]
    %vm210 = vcmask 785408
    %v212 = vsel %vm210, %v209, 0
    %214 = vmatprep.subr.mxu0 0.0
    %215 = vmatpush1.msra.mxu0 %v197
    %216 = vmatprep.subr.mxu0 0.0
    %217 = vmatpush1.msra.mxu0 %v198
    %218 = vmatprep.subr.mxu0 0.0
    %219 = vmatpush1.msra.mxu0 %v199
    %220 = vmatprep.subr.mxu0 0.0
    %221 = vmatpush1.msra.mxu0 %v200
    %222 = vmatprep.subr.mxu0 0.0
    %223 = vmatpush1.msra.mxu0 %v201
    %224 = vmatprep.subr.mxu0 0.0
    %225 = vmatpush1.msra.mxu0 %v202
    %226 = vmatprep.subr.mxu0 0.0
    %227 = vmatpush1.msra.mxu0 %v203
    %228 = vmatprep.subr.mxu0 0.0
    %229 = vmatpush1.msra.mxu0 %v204
    %230 = vmatprep.subr.mxu0 0.0
    %231 = vmatpush1.msra.mxu0 %v205
    %232 = vmatprep.subr.mxu0 0.0
    %233 = vmatpush1.msra.mxu0 %v206
    %234 = vmatprep.subr.mxu0 0.0
    %235 = vmatpush1.msra.mxu0 %v207
    %236 = vmatprep.subr.mxu0 0.0
    %237 = vmatpush1.msra.mxu0 %v208
    %238 = vmatprep.subr.mxu0 0.0
    %239 = vmatpush1.msra.mxu0 0.0
    %240 = vmatprep.subr.mxu0 0.0
    %241 = vmatpush1.msra.mxu0 0.0
    %242 = vmatprep.subr.mxu0 0.0
    %243 = vmatpush1.msra.mxu0 0.0
    %244 = vmatprep.subr.mxu0 0.0
    %245 = vmatpush1.msra.mxu0 0.0
    %246 = vmatprep.subr.mxu0 0.0
    %247 = vmatpush1.msra.mxu0 0.0
    %248 = vmatprep.subr.mxu0 0.0
    %249 = vmatpush1.msra.mxu0 0.0
    %250 = vmatprep.subr.mxu0 0.0
    %251 = vmatpush1.msra.mxu0 0.0
    %252 = vmatprep.subr.mxu0 0.0
    %253 = vmatpush1.msra.mxu0 0.0
    %254 = vmatprep.subr.mxu0 0.0
    %255 = vmatpush1.msra.mxu0 0.0
    %256 = vmatprep.subr.mxu0 0.0
    %257 = vmatpush1.msra.mxu0 0.0
    %258 = vmatprep.subr.mxu0 0.0
    %259 = vmatpush1.msra.mxu0 0.0
    %260 = vmatprep.subr.mxu0 0.0
    %261 = vmatpush1.msra.mxu0 0.0
    %262 = vmatprep.subr.mxu0 0.0
    %263 = vmatpush1.msra.mxu0 0.0
    %264 = vmatprep.subr.mxu0 0.0
    %265 = vmatpush1.msra.mxu0 0.0
    %266 = vmatprep.subr.mxu0 0.0
    %267 = vmatpush1.msra.mxu0 0.0
    %268 = vmatprep.subr.mxu0 0.0
    %269 = vmatpush1.msra.mxu0 0.0
    %270 = vmatprep.subr.mxu0 0.0
    %271 = vmatpush1.msra.mxu0 0.0
    %272 = vmatprep.subr.mxu0 0.0
    %273 = vmatpush1.msra.mxu0 0.0
    %274 = vmatprep.subr.mxu0 0.0
    %275 = vmatpush1.msra.mxu0 0.0
    %276 = vmatprep.subr.mxu0 0.0
    %277 = vmatpush1.msra.mxu0 0.0
    %278 = vmatprep.mubr.f32.mxu0 0.0
    %279 = vmatmul.mubr.f32.gmra.mrb[0].mxu0 %v212
    %v280 = vpop.f32.mrb[0].mxu0
    %v281 = vadd.f32 0.0, %v280
    %v282 = vpop.f32.mrb[0].mxu0
    %283 = vdwg.mxu0
    %v284 = vlaneseq
    %v285 = vshrl.u32 %v284, 7
    %v286 = vadd.s32 %v285, 8
    %v287 = vadd.s32 %v285, 16
    %v288 = vadd.s32 %v285, 24
    %v289 = vadd.s32 %v285, 32
    %v290 = vadd.s32 %v285, 40
    %v291 = vadd.s32 %v285, 48
    %v292 = vadd.s32 %v285, 56
    %v293 = vadd.s32 %v285, 64
    %v294 = vadd.s32 %v285, 72
    %v295 = vadd.s32 %v285, 80
    %v296 = vadd.s32 %v285, 88
    %v297 = vlaneseq
    %v298 = vand.u32 %v297, 127
    %v299 = vmul.u32 %v298, 12
    %vm300 = vcmp.ge.s32.totalorder %v285, %v299
    %vm301 = vcmp.ge.s32.totalorder %v286, %v299
    %vm302 = vcmp.ge.s32.totalorder %v287, %v299
    %vm303 = vcmp.ge.s32.totalorder %v288, %v299
    %vm304 = vcmp.ge.s32.totalorder %v289, %v299
    %vm305 = vcmp.ge.s32.totalorder %v290, %v299
    %vm306 = vcmp.ge.s32.totalorder %v291, %v299
    %vm307 = vcmp.ge.s32.totalorder %v292, %v299
    %vm308 = vcmp.ge.s32.totalorder %v293, %v299
    %vm309 = vcmp.ge.s32.totalorder %v294, %v299
    %vm310 = vcmp.ge.s32.totalorder %v295, %v299
    %vm311 = vcmp.ge.s32.totalorder %v296, %v299
    %v312 = vadd.s32 %v298, 1
    %v313 = vmul.u32 %v312, 12
    %vm314 = vcmp.lt.s32.totalorder %v285, %v313
    %vm315 = vcmp.lt.s32.totalorder %v286, %v313
    %vm316 = vcmp.lt.s32.totalorder %v287, %v313
    %vm317 = vcmp.lt.s32.totalorder %v288, %v313
    %vm318 = vcmp.lt.s32.totalorder %v289, %v313
    %vm319 = vcmp.lt.s32.totalorder %v290, %v313
    %vm320 = vcmp.lt.s32.totalorder %v291, %v313
    %vm321 = vcmp.lt.s32.totalorder %v292, %v313
    %vm322 = vcmp.lt.s32.totalorder %v293, %v313
    %vm323 = vcmp.lt.s32.totalorder %v294, %v313
    %vm324 = vcmp.lt.s32.totalorder %v295, %v313
    %vm325 = vcmp.lt.s32.totalorder %v296, %v313
    %vm326 = vmand %vm300, %vm314
    %vm327 = vmand %vm301, %vm315
    %vm328 = vmand %vm302, %vm316
    %vm329 = vmand %vm303, %vm317
    %vm330 = vmand %vm304, %vm318
    %vm331 = vmand %vm305, %vm319
    %vm332 = vmand %vm306, %vm320
    %vm333 = vmand %vm307, %vm321
    %vm334 = vmand %vm308, %vm322
    %vm335 = vmand %vm309, %vm323
    %vm336 = vmand %vm310, %vm324
    %vm337 = vmand %vm311, %vm325
    %v338 = vsel %vm326, 1.0, 0.0
    %v339 = vsel %vm327, 1.0, 0.0
    %v340 = vsel %vm328, 1.0, 0.0
    %v341 = vsel %vm329, 1.0, 0.0
    %v342 = vsel %vm330, 1.0, 0.0
    %v343 = vsel %vm331, 1.0, 0.0
    %v344 = vsel %vm332, 1.0, 0.0
    %v345 = vsel %vm333, 1.0, 0.0
    %v346 = vsel %vm334, 1.0, 0.0
    %v347 = vsel %vm335, 1.0, 0.0
    %v348 = vsel %vm336, 1.0, 0.0
    %v349 = vsel %vm337, 1.0, 0.0
    %s350 = sld [smem:[#allocation2]]
    %v351 = vstv %s350
    %v353 = vsel %vm210, %v281, 0
    %355 = vmatprep.subr.mxu0 0.0
    %356 = vmatpush1.msra.mxu0 %v338
    %357 = vmatprep.subr.mxu0 0.0
    %358 = vmatpush1.msra.mxu0 %v339
    %359 = vmatprep.subr.mxu0 0.0
    %360 = vmatpush1.msra.mxu0 %v340
    %361 = vmatprep.subr.mxu0 0.0
    %362 = vmatpush1.msra.mxu0 %v341
    %363 = vmatprep.subr.mxu0 0.0
    %364 = vmatpush1.msra.mxu0 %v342
    %365 = vmatprep.subr.mxu0 0.0
    %366 = vmatpush1.msra.mxu0 %v343
    %367 = vmatprep.subr.mxu0 0.0
    %368 = vmatpush1.msra.mxu0 %v344
    %369 = vmatprep.subr.mxu0 0.0
    %370 = vmatpush1.msra.mxu0 %v345
    %371 = vmatprep.subr.mxu0 0.0
    %372 = vmatpush1.msra.mxu0 %v346
    %373 = vmatprep.subr.mxu0 0.0
    %374 = vmatpush1.msra.mxu0 %v347
    %375 = vmatprep.subr.mxu0 0.0
    %376 = vmatpush1.msra.mxu0 %v348
    %377 = vmatprep.subr.mxu0 0.0
    %378 = vmatpush1.msra.mxu0 %v349
    %379 = vmatprep.subr.mxu0 0.0
    %380 = vmatpush1.msra.mxu0 0.0
    %381 = vmatprep.subr.mxu0 0.0
    %382 = vmatpush1.msra.mxu0 0.0
    %383 = vmatprep.subr.mxu0 0.0
    %384 = vmatpush1.msra.mxu0 0.0
    %385 = vmatprep.subr.mxu0 0.0
    %386 = vmatpush1.msra.mxu0 0.0
    %387 = vmatprep.subr.mxu0 0.0
    %388 = vmatpush1.msra.mxu0 0.0
    %389 = vmatprep.subr.mxu0 0.0
    %390 = vmatpush1.msra.mxu0 0.0
    %391 = vmatprep.subr.mxu0 0.0
    %392 = vmatpush1.msra.mxu0 0.0
    %393 = vmatprep.subr.mxu0 0.0
    %394 = vmatpush1.msra.mxu0 0.0
    %395 = vmatprep.subr.mxu0 0.0
    %396 = vmatpush1.msra.mxu0 0.0
    %397 = vmatprep.subr.mxu0 0.0
    %398 = vmatpush1.msra.mxu0 0.0
    %399 = vmatprep.subr.mxu0 0.0
    %400 = vmatpush1.msra.mxu0 0.0
    %401 = vmatprep.subr.mxu0 0.0
    %402 = vmatpush1.msra.mxu0 0.0
    %403 = vmatprep.subr.mxu0 0.0
    %404 = vmatpush1.msra.mxu0 0.0
    %405 = vmatprep.subr.mxu0 0.0
    %406 = vmatpush1.msra.mxu0 0.0
    %407 = vmatprep.subr.mxu0 0.0
    %408 = vmatpush1.msra.mxu0 0.0
    %409 = vmatprep.subr.mxu0 0.0
    %410 = vmatpush1.msra.mxu0 0.0
    %411 = vmatprep.subr.mxu0 0.0
    %412 = vmatpush1.msra.mxu0 0.0
    %413 = vmatprep.subr.mxu0 0.0
    %414 = vmatpush1.msra.mxu0 0.0
    %415 = vmatprep.subr.mxu0 0.0
    %416 = vmatpush1.msra.mxu0 0.0
    %417 = vmatprep.subr.mxu0 0.0
    %418 = vmatpush1.msra.mxu0 0.0
    %419 = vmatprep.mubr.f32.mxu0 0.0
    %420 = vmatmul.mubr.f32.gmra.mrb[0].mxu0 %v353
    %v421 = vpop.f32.mrb[0].mxu0
    %v422 = vadd.f32 %v351, %v421
    %v423 = vpop.f32.mrb[0].mxu0
    %424 = vdwg.mxu0
    %vm425 = vcmask 57344
    %426 = vst.msk [vmem:[#allocation3] sm:$0x1] %vm425, %v422
    // Predicated region
    $region18: #{model_wrapper_predict.1} parent=1 // pred_check
      _
    $region19: #{model_wrapper_predict.1} parent=1 // pred_check_branch
      %428 = sbr.rel (0) target = $region21
    $region20: #{model_wrapper_predict.1} parent=1 // pred_region
      %s430 = ssub.s32 16, 16
      %431 = vsyncadd [#allocation4], %s430
      %s433 = sshll.u32 [#allocation3], 4
      %s434 = int_to_ptr.vmem [resolvable:$true] %s433
      %436 = dma.vmem_to_hbm [thread:$0]  %s434, 16, %s4, [#allocation4]
    $region21: #{model_wrapper_predict.1} parent=1 // pred_fallthru
      _
    // Predicated region
    $region22: #{model_wrapper_predict.1} parent=1 // pred_check
      _
    $region23: #{model_wrapper_predict.1} parent=1 // pred_check_branch
      %438 = sbr.rel (0) target = $region25
    $region24: #{model_wrapper_predict.1} parent=1 // pred_region
      %439 = dma.done [#allocation4], 16
    $region25: #{model_wrapper_predict.1} parent=1 // pred_fallthru
      _
    %440 = vsyncpa [#allocation4], 1

</llo_original>
